<compile_context>
chip_gen: v5e
topology: v5e:2x2
jax: 0.10.0
libtpu: 0.0.40
codegen_flags: <defaults>
</compile_context>

<pallas_src>
import math

import jax
import jax.numpy as jnp
from jax.experimental import pallas as pl
from jax.experimental.pallas import tpu as pltpu


def _round_up(n: int, m: int) -> int:
    return ((n + m - 1) // m) * m


def _vmem_capacity_bytes() -> int:
    try:
        return int(pltpu.get_tpu_info().vmem_capacity_bytes)
    except Exception:
        return 64 << 20  # conservative: v7x has the smallest per-core VMEM


def _vocab_logsoftmax_kernel(x_ref, w_ref, b_ref, o_ref,
                             cache_ref, m_ref, l_ref, lse_ref):
    # Grid: (row_tile i, pass p, vocab_tile v)
    #   p == 0 : matmul + online logsumexp stats, logits cached in VMEM.
    #   p == 1 : emit log-probs from the cache (no matmul, no weight DMA).
    p = pl.program_id(1)
    v = pl.program_id(2)
    tv = o_ref.shape[-1]

    @pl.when(jnp.logical_and(p == 0, v == 0))
    def _init():
        # Finite (not -inf) init: avoids inf-inf / 0*inf NaNs in degenerate tiles.
        m_ref[...] = jnp.full_like(m_ref, -3e38)
        l_ref[...] = jnp.zeros_like(l_ref)

    @pl.when(p == 0)
    def _matmul_and_stats():
        # (tm, E) bf16 @ (E, tv) bf16 on the MXU, f32 accumulation; f32 bias add.
        logits = jnp.dot(x_ref[...], w_ref[...],
                         preferred_element_type=jnp.float32)
        logits = logits + b_ref[...]                      # (tm, tv) + (1, tv)
        col0 = pl.multiple_of(v * tv, tv)
        cache_ref[:, pl.ds(col0, tv)] = logits            # keep for pass 1
        m_old = m_ref[...]                                # (tm, 1)
        m_new = jnp.maximum(m_old, jnp.max(logits, axis=-1, keepdims=True))
        l_ref[...] = l_ref[...] * jnp.exp(m_old - m_new) + jnp.sum(
            jnp.exp(logits - m_new), axis=-1, keepdims=True)
        m_ref[...] = m_new

    @pl.when(jnp.logical_and(p == 1, v == 0))
    def _finalize_lse():
        # Converged logsumexp, computed once per row tile (not per vocab tile).
        lse_ref[...] = m_ref[...] + jnp.log(l_ref[...])

    @pl.when(p == 1)
    def _emit():
        col0 = pl.multiple_of(v * tv, tv)
        o_ref[...] = (cache_ref[:, pl.ds(col0, tv)] - lse_ref[...]).astype(o_ref.dtype)


def prepare_vocab_output_params(weight, bias):
    """One-time prep of the nn.Linear params - cache the result across calls.

    weight: (V, E) PyTorch layout, bias: (V,).
    Returns (w_t, b2d, V): w_t is (E, V128) bf16 (lane-dense vocab axis), b2d is
    (1, V128) f32 with padded columns set to -1e30 (so exp underflows to 0).
    """
    V, E = weight.shape
    V128 = _round_up(V, 128)
    w_t = weight.T.astype(jnp.bfloat16)
    b2d = bias.reshape(1, V).astype(jnp.float32)
    if V128 != V:
        w_t = jnp.pad(w_t, ((0, 0), (0, V128 - V)))
        b2d = jnp.pad(b2d, ((0, 0), (0, V128 - V)), constant_values=-1e30)
    return w_t, b2d, V


def vocab_output_log_softmax_prepared(x, w_t, b2d, vocab_size, *,
                                      tm_max=1024, tv_max=2048, out_dtype=None):
    """x: (B, S, E); (w_t, b2d, vocab_size) from prepare_vocab_output_params.

    Returns log_softmax(x @ weight.T + bias, axis=-1) with shape (B, S, V).
    """
    B, S, E = x.shape
    assert w_t.shape[0] == E, (w_t.shape, E)
    V = int(vocab_size)
    V_p = int(w_t.shape[1])                      # 128-aligned vocab
    out_dtype = x.dtype if out_dtype is None else out_dtype
    os_ = jnp.dtype(out_dtype).itemsize
    rows = B * S

    vmem_cap = _vmem_capacity_bytes()
    budget = int(0.55 * vmem_cap)                # leave headroom for the compiler

    # Vocab tile: largest multiple of 128 that divides V_p, capped by tv_max and
    # by a double-buffered (E, tv) bf16 weight-tile budget.
    tv_cap = min(tv_max, max(128, (int(budget * 0.4) // (4 * E)) // 128 * 128))
    tv = 128
    for mult in range(max(1, tv_cap // 128), 0, -1):
        cand = 128 * mult
        if V_p % cand == 0:
            tv = cand
            break
    nvi = V_p // tv

    # Row tile: as large as the VMEM budget allows (one weight stream per row
    # tile, so bigger tm directly cuts total weight HBM traffic).
    per_row = V_p * 4 + 4 * E + 2 * tv * os_ + 4 * tv + 32
    fixed = 2 * E * tv * 2 + 2 * tv * 4
    tm_fit = max(8, (budget - fixed) // per_row)
    tm = max(8, (min(tm_max, tm_fit, _round_up(rows, 8)) // 8) * 8)
    # v7x megacore: keep >= 2 row tiles when there is enough work so the
    # 'parallel' row axis can feed both TensorCores.
    if rows >= 512 and tm >= rows:
        tm = max(8, _round_up((rows + 1) // 2, 8))
    rows_p = _round_up(rows, tm)
    nri = rows_p // tm

    x2d = x.reshape(rows, E).astype(jnp.bfloat16)
    if rows_p != rows:
        x2d = jnp.pad(x2d, ((0, rows_p - rows), (0, 0)))

    vmem_est = (
        tm * V_p * 4            # logits row-strip cache (f32)
        + 2 * tm * E * 2        # x tile (bf16), double buffered
        + 2 * E * tv * 2        # weight tile (bf16), double buffered
        + 2 * tv * 4            # bias tile (f32), double buffered
        + 2 * tm * tv * os_     # output tile, double buffered
        + tm * tv * 4           # in-flight f32 logits temporary
        + 16 * tm               # m / l / lse scratch
    )
    vmem_limit = min(int(vmem_est * 1.25) + (4 << 20), int(0.75 * vmem_cap))
    vmem_limit = max(vmem_limit, min(16 << 20, int(0.75 * vmem_cap)))

    cost = pl.CostEstimate(
        flops=2 * rows_p * E * V_p,
        transcendentals=rows_p * V_p,
        bytes_accessed=(rows_p * E * 2
                        + nri * (E * V_p * 2 + V_p * 4)
                        + rows_p * V_p * os_),
    )

    out = pl.pallas_call(
        _vocab_logsoftmax_kernel,
        out_shape=jax.ShapeDtypeStruct((rows_p, V_p), out_dtype),
        grid_spec=pltpu.PrefetchScalarGridSpec(
            num_scalar_prefetch=0,
            grid=(nri, 2, nvi),
            in_specs=[
                # Activation row tile: resident across the pass/vocab axes.
                pl.BlockSpec((tm, E), lambda i, p, v: (i, 0)),
                # Weight / bias stream only during pass 0; during pass 1 they
                # park on block (0, 0) so the emit pass does zero weight DMA.
                pl.BlockSpec((E, tv), lambda i, p, v: (0, v * (1 - p))),
                pl.BlockSpec((1, tv), lambda i, p, v: (0, v * (1 - p))),
            ],
            # Pass 0 parks on output block (i, 0) (never flushed before pass 1
            # rewrites it at v == 0, since the block index does not change);
            # pass 1 walks (i, v) emitting the final log-probs.
            out_specs=pl.BlockSpec((tm, tv), lambda i, p, v: (i, v * p)),
            scratch_shapes=[
                pltpu.VMEM((tm, V_p), jnp.float32),   # logits row-strip cache
                pltpu.VMEM((tm, 1), jnp.float32),     # running max m
                pltpu.VMEM((tm, 1), jnp.float32),     # running sum-exp l
                pltpu.VMEM((tm, 1), jnp.float32),     # lse = m + log(l)
            ],
        ),
        compiler_params=pltpu.CompilerParams(
            dimension_semantics=("parallel", "arbitrary", "arbitrary"),
            vmem_limit_bytes=vmem_limit,
        ),
        cost_estimate=cost,
    )(x2d, w_t, b2d)

    if rows_p != rows or V_p != V:
        out = out[:rows, :V]        # only pay the slice when padding was needed
    return out.reshape(B, S, V)


def vocab_output_log_softmax(x, weight, bias, **kwargs):
    """Convenience wrapper (re-preps the weight every call).  For repeated use,
    call prepare_vocab_output_params once and vocab_output_log_softmax_prepared."""
    w_t, b2d, V = prepare_vocab_output_params(weight, bias)
    return vocab_output_log_softmax_prepared(x, w_t, b2d, V, **kwargs)


def init_linear_params(key, embedding_dimension, tgt_vocab_size):
    """Deterministic init matching nn.Linear defaults: U(-1/sqrt(fan_in), +)."""
    kw, kb = jax.random.split(key)
    bound = 1.0 / math.sqrt(embedding_dimension)
    weight = jax.random.uniform(
        kw, (tgt_vocab_size, embedding_dimension), jnp.float32, -bound, bound)
    bias = jax.random.uniform(kb, (tgt_vocab_size,), jnp.float32, -bound, bound)
    return weight, bias


if __name__ == "__main__":
    # Shapes consistent with the module's forward:
    #   decoder_output_logits: (batch=2, seq=9, embedding_dimension=64),
    #   tgt_vocab_size = 500  (not a multiple of 128 -> vocab padding; rows = 18
    #   -> row padding; tv_max=128 -> multi-tile online logsumexp path).
    batch, seq, embed_dim, vocab = 2, 9, 64, 500

    key = jax.random.PRNGKey(0)
    k_x, k_params = jax.random.split(key)

    x = jax.random.normal(k_x, (batch, seq, embed_dim), dtype=jnp.float32)
    weight, bias = init_linear_params(k_params, embed_dim, vocab)

    # One-time weight prep (cache these across steps in real use).
    w_t, b2d, V = prepare_vocab_output_params(weight, bias)

    out = vocab_output_log_softmax_prepared(x, w_t, b2d, V, tv_max=128)
    out = jax.block_until_ready(out)
    assert out.shape == (batch, seq, vocab)

    # Reference with matched matmul precision (bf16 inputs, f32 accumulation).
    logits_ref = (
        jnp.dot(
            x.reshape(-1, embed_dim).astype(jnp.bfloat16),
            weight.T.astype(jnp.bfloat16),
            preferred_element_type=jnp.float32,
        )
        + bias
    )
    ref = jax.nn.log_softmax(logits_ref, axis=-1).reshape(batch, seq, vocab)
    assert jnp.allclose(out, ref, atol=1e-4, rtol=1e-4), float(
        jnp.max(jnp.abs(out - ref)))

    # Loose check against the original all-f32 module semantics.
    ref_f32 = jax.nn.log_softmax(x @ weight.T + bias, axis=-1)
    assert jnp.allclose(out, ref_f32, atol=1e-1), float(
        jnp.max(jnp.abs(out - ref_f32)))

    print("KERNEL_OK")
</pallas_src>

<mosaic_0001>
module attributes {stable_mosaic.version = 11 : i64} {
  func.func @_vocab_logsoftmax_kernel(%arg0: i32, %arg1: i32, %arg2: i32, %arg3: memref<24x64xbf16, #tpu.memory_space<vmem>>, %arg4: memref<64x128xbf16, #tpu.memory_space<vmem>>, %arg5: memref<1x128xf32, #tpu.memory_space<vmem>>, %arg6: memref<24x128xf32, #tpu.memory_space<vmem>>, %arg7: memref<24x512xf32, #tpu.memory_space<vmem>>, %arg8: memref<24x1xf32, #tpu.memory_space<vmem>>, %arg9: memref<24x1xf32, #tpu.memory_space<vmem>>, %arg10: memref<24x1xf32, #tpu.memory_space<vmem>>) attributes {dimension_semantics = [#tpu.dimension_semantics<parallel>, #tpu.dimension_semantics<arbitrary>, #tpu.dimension_semantics<arbitrary>], iteration_bounds = array<i64: 1, 2, 4>, scalar_prefetch = 0 : i64, scratch_operands = 4 : i64, tpu.core_type = #tpu.core_type<tc>, window_params = [{transform_indices = @transform_0, window_bounds = array<i64: 24, 64>}, {transform_indices = @transform_1, window_bounds = array<i64: 64, 128>}, {transform_indices = @transform_2, window_bounds = array<i64: 1, 128>}, {transform_indices = @transform_3, window_bounds = array<i64: 24, 128>}]} {
    %c0_i32 = arith.constant 0 : i32
    %0 = arith.cmpi eq, %arg1, %c0_i32 : i32
    %c0_i32_0 = arith.constant 0 : i32
    %1 = arith.cmpi eq, %arg2, %c0_i32_0 : i32
    %2 = arith.andi %0, %1 : i1
    %3 = arith.extui %2 : i1 to i32
    %c0_i32_1 = arith.constant 0 : i32
    %4 = arith.cmpi ne, %3, %c0_i32_1 : i32
    scf.if %4 {
      %cst = arith.constant -3.000000e+38 : f32
      %16 = vector.broadcast %cst : f32 to vector<24x1xf32>
      %c0 = arith.constant 0 : index
      %c0_8 = arith.constant 0 : index
      %17 = vector.load %arg8[%c0, %c0_8] : memref<24x1xf32, #tpu.memory_space<vmem>>, vector<24x1xf32>
      tpu.vector_store %arg8[%c0, %c0_8], %16 {strides = array<i32>} : memref<24x1xf32, #tpu.memory_space<vmem>>, vector<24x1xf32>,
      %cst_9 = arith.constant 0.000000e+00 : f32
      %18 = vector.broadcast %cst_9 : f32 to vector<24x1xf32>
      %c0_10 = arith.constant 0 : index
      %c0_11 = arith.constant 0 : index
      %19 = vector.load %arg9[%c0_10, %c0_11] : memref<24x1xf32, #tpu.memory_space<vmem>>, vector<24x1xf32>
      tpu.vector_store %arg9[%c0_10, %c0_11], %18 {strides = array<i32>} : memref<24x1xf32, #tpu.memory_space<vmem>>, vector<24x1xf32>,
    } else {
    }
    %c0_i32_2 = arith.constant 0 : i32
    %5 = arith.cmpi eq, %arg1, %c0_i32_2 : i32
    %6 = arith.extui %5 : i1 to i32
    %c0_i32_3 = arith.constant 0 : i32
    %7 = arith.cmpi ne, %6, %c0_i32_3 : i32
    scf.if %7 {
      %c0 = arith.constant 0 : index
      %c0_8 = arith.constant 0 : index
      %16 = vector.load %arg3[%c0, %c0_8] : memref<24x64xbf16, #tpu.memory_space<vmem>>, vector<24x64xbf16>
      %c0_9 = arith.constant 0 : index
      %c0_10 = arith.constant 0 : index
      %17 = vector.load %arg4[%c0_9, %c0_10] : memref<64x128xbf16, #tpu.memory_space<vmem>>, vector<64x128xbf16>
      %cst = arith.constant dense<0.000000e+00> : vector<24x128xf32>
      %18 = tpu.matmul %16, %17, %cst {dimension_numbers = #tpu.dot_dimension_numbers<[1], [0], [0], [1], [0, 0, 1, 1], [], []>} : vector<24x64xbf16>, vector<64x128xbf16>, vector<24x128xf32> -> vector<24x128xf32>
      %c0_11 = arith.constant 0 : index
      %c0_12 = arith.constant 0 : index
      %19 = vector.load %arg5[%c0_11, %c0_12] : memref<1x128xf32, #tpu.memory_space<vmem>>, vector<1x128xf32>
      %20 = vector.broadcast %19 : vector<1x128xf32> to vector<24x128xf32>
      %21 = arith.addf %18, %20 : vector<24x128xf32>
      %c128_i32 = arith.constant 128 : i32
      %22 = arith.muli %arg2, %c128_i32 : i32
      %23 = tpu.assume_multiple %22, 128 : i32
      %c0_13 = arith.constant 0 : index
      %24 = arith.index_cast %23 : i32 to index
      %25 = vector.load %arg7[%c0_13, %24] : memref<24x512xf32, #tpu.memory_space<vmem>>, vector<24x128xf32>
      tpu.vector_store %arg7[%c0_13, %24], %21 {strides = array<i32>} : memref<24x512xf32, #tpu.memory_space<vmem>>, vector<24x128xf32>,
      %c0_14 = arith.constant 0 : index
      %c0_15 = arith.constant 0 : index
      %26 = vector.load %arg8[%c0_14, %c0_15] : memref<24x1xf32, #tpu.memory_space<vmem>>, vector<24x1xf32>
      %cst_16 = arith.constant dense<0xFF800000> : vector<24xf32>
      %27 = vector.multi_reduction <maximumf>, %21, %cst_16 [1] : vector<24x128xf32> to vector<24xf32>
      %28 = vector.shape_cast %27 : vector<24xf32> to vector<24x1xf32>
      %29 = arith.maximumf %26, %28 : vector<24x1xf32>
      %c0_17 = arith.constant 0 : index
      %c0_18 = arith.constant 0 : index
      %30 = vector.load %arg9[%c0_17, %c0_18] : memref<24x1xf32, #tpu.memory_space<vmem>>, vector<24x1xf32>
      %31 = arith.subf %26, %29 : vector<24x1xf32>
      %32 = math.exp %31 : vector<24x1xf32>
      %33 = arith.mulf %30, %32 : vector<24x1xf32>
      %34 = vector.broadcast %29 : vector<24x1xf32> to vector<24x128xf32>
      %35 = arith.subf %21, %34 : vector<24x128xf32>
      %36 = math.exp %35 : vector<24x128xf32>
      %cst_19 = arith.constant dense<0.000000e+00> : vector<24xf32>
      %37 = vector.multi_reduction <add>, %36, %cst_19 [1] : vector<24x128xf32> to vector<24xf32>
      %38 = vector.shape_cast %37 : vector<24xf32> to vector<24x1xf32>
      %39 = arith.addf %33, %38 : vector<24x1xf32>
      %c0_20 = arith.constant 0 : index
      %c0_21 = arith.constant 0 : index
      %40 = vector.load %arg9[%c0_20, %c0_21] : memref<24x1xf32, #tpu.memory_space<vmem>>, vector<24x1xf32>
      tpu.vector_store %arg9[%c0_20, %c0_21], %39 {strides = array<i32>} : memref<24x1xf32, #tpu.memory_space<vmem>>, vector<24x1xf32>,
      %c0_22 = arith.constant 0 : index
      %c0_23 = arith.constant 0 : index
      %41 = vector.load %arg8[%c0_22, %c0_23] : memref<24x1xf32, #tpu.memory_space<vmem>>, vector<24x1xf32>
      tpu.vector_store %arg8[%c0_22, %c0_23], %29 {strides = array<i32>} : memref<24x1xf32, #tpu.memory_space<vmem>>, vector<24x1xf32>,
    } else {
    }
    %c1_i32 = arith.constant 1 : i32
    %8 = arith.cmpi eq, %arg1, %c1_i32 : i32
    %c0_i32_4 = arith.constant 0 : i32
    %9 = arith.cmpi eq, %arg2, %c0_i32_4 : i32
    %10 = arith.andi %8, %9 : i1
    %11 = arith.extui %10 : i1 to i32
    %c0_i32_5 = arith.constant 0 : i32
    %12 = arith.cmpi ne, %11, %c0_i32_5 : i32
    scf.if %12 {
      %c0 = arith.constant 0 : index
      %c0_8 = arith.constant 0 : index
      %16 = vector.load %arg8[%c0, %c0_8] : memref<24x1xf32, #tpu.memory_space<vmem>>, vector<24x1xf32>
      %c0_9 = arith.constant 0 : index
      %c0_10 = arith.constant 0 : index
      %17 = vector.load %arg9[%c0_9, %c0_10] : memref<24x1xf32, #tpu.memory_space<vmem>>, vector<24x1xf32>
      %18 = math.log %17 : vector<24x1xf32>
      %19 = arith.addf %16, %18 : vector<24x1xf32>
      %c0_11 = arith.constant 0 : index
      %c0_12 = arith.constant 0 : index
      %20 = vector.load %arg10[%c0_11, %c0_12] : memref<24x1xf32, #tpu.memory_space<vmem>>, vector<24x1xf32>
      tpu.vector_store %arg10[%c0_11, %c0_12], %19 {strides = array<i32>} : memref<24x1xf32, #tpu.memory_space<vmem>>, vector<24x1xf32>,
    } else {
    }
    %c1_i32_6 = arith.constant 1 : i32
    %13 = arith.cmpi eq, %arg1, %c1_i32_6 : i32
    %14 = arith.extui %13 : i1 to i32
    %c0_i32_7 = arith.constant 0 : i32
    %15 = arith.cmpi ne, %14, %c0_i32_7 : i32
    scf.if %15 {
      %c128_i32 = arith.constant 128 : i32
      %16 = arith.muli %arg2, %c128_i32 : i32
      %17 = tpu.assume_multiple %16, 128 : i32
      %c0 = arith.constant 0 : index
      %18 = arith.index_cast %17 : i32 to index
      %19 = vector.load %arg7[%c0, %18] : memref<24x512xf32, #tpu.memory_space<vmem>>, vector<24x128xf32>
      %c0_8 = arith.constant 0 : index
      %c0_9 = arith.constant 0 : index
      %20 = vector.load %arg10[%c0_8, %c0_9] : memref<24x1xf32, #tpu.memory_space<vmem>>, vector<24x1xf32>
      %21 = vector.broadcast %20 : vector<24x1xf32> to vector<24x128xf32>
      %22 = arith.subf %19, %21 : vector<24x128xf32>
      %c0_10 = arith.constant 0 : index
      %c0_11 = arith.constant 0 : index
      %23 = vector.load %arg6[%c0_10, %c0_11] : memref<24x128xf32, #tpu.memory_space<vmem>>, vector<24x128xf32>
      tpu.vector_store %arg6[%c0_10, %c0_11], %22 {strides = array<i32>} : memref<24x128xf32, #tpu.memory_space<vmem>>, vector<24x128xf32>,
    } else {
    }
    return
  }
  func.func @transform_0(%arg0: i32, %arg1: i32, %arg2: i32) -> (i32, i32) {
    %c0_i32 = arith.constant 0 : i32
    %c0_i32_0 = arith.constant 0 : i32
    return %arg0, %c0_i32 : i32, i32
  }
  func.func @transform_1(%arg0: i32, %arg1: i32, %arg2: i32) -> (i32, i32) {
    %c1_i32 = arith.constant 1 : i32
    %0 = arith.subi %c1_i32, %arg1 : i32
    %1 = arith.muli %arg2, %0 : i32
    %c0_i32 = arith.constant 0 : i32
    %c0_i32_0 = arith.constant 0 : i32
    return %c0_i32, %1 : i32, i32
  }
  func.func @transform_2(%arg0: i32, %arg1: i32, %arg2: i32) -> (i32, i32) {
    %c1_i32 = arith.constant 1 : i32
    %0 = arith.subi %c1_i32, %arg1 : i32
    %1 = arith.muli %arg2, %0 : i32
    %c0_i32 = arith.constant 0 : i32
    %c0_i32_0 = arith.constant 0 : i32
    return %c0_i32, %1 : i32, i32
  }
  func.func @transform_3(%arg0: i32, %arg1: i32, %arg2: i32) -> (i32, i32) {
    %0 = arith.muli %arg2, %arg1 : i32
    %c0_i32 = arith.constant 0 : i32
    return %arg0, %0 : i32, i32
  }
}

</mosaic_0001>

<llo_original>
// kernel: tpu_custom_call.1
$region0: #{tpu_custom_call.1}
  #allocation0 [shape = 'u32[]', space=smem, size = 0x4, offset = 0x4, fixed_abs, tag = 'smem constant byte address 0x4 - core index']
  #allocation1 [shape = 'u32[72,128]{1,0:T(1,128)}', space=vmem, size = 0x9000, scoped, tag = 'internal scratch']
  #allocation2 [shape = 'f32[24,512]{1,0:T(8,128)}', space=vmem, size = 0xc000, scoped, tag = 'scratch operand']
  #allocation3 [shape = 'f32[24,1]{1,0:T(8,128)}', space=vmem, size = 0x3000, scoped, tag = 'scratch operand']
  #allocation4 [shape = 'f32[24,1]{1,0:T(8,128)}', space=vmem, size = 0x3000, scoped, tag = 'scratch operand']
  #allocation5 [shape = 'f32[24,1]{1,0:T(8,128)}', space=vmem, size = 0x3000, scoped, tag = 'scratch operand']
  %s0 = inlined_call_operand.hbm [shape: bf16[24,64], index: 0, kind: input, shape index: {}]
  %s1 = inlined_call_operand.hbm [shape: bf16[64,512], index: 1, kind: input, shape index: {}]
  %s2 = inlined_call_operand.hbm [shape: f32[1,512], index: 2, kind: input, shape index: {}]
  %s3 = inlined_call_operand.hbm [shape: f32[24,512], index: 3, kind: output, shape index: {}]
  %s4 = sld [smem:[#allocation0]]
  $region73: #{tpu_custom_call.1} parent=0
    _
  %s6 = ssub.s32 1, %s4
  %s7 = scalar_select 0, %s6, %s4
  $region1: #{tpu_custom_call.1} parent=0
    #allocation6 [shape = 'u8[6144]{0}', space=vmem, size = 0x1800, scoped, tag = 'input window, operand 0, single buffered']
    #allocation7 [shape = 's32[2]{0}', space=sflag, size = 0x8, scoped, tag = 'scoped memory for tpu_custom_call.1']
    #allocation8 [shape = 's32[2]{0}', space=sflag, size = 0x8, scoped, tag = 'scoped memory for tpu_custom_call.1']
    #allocation9 [shape = 'u8[32768]{0}', space=vmem, size = 0x8000, scoped, tag = 'input window, operand 1']
    #allocation10 [shape = 's32[2]{0}', space=sflag, size = 0x8, scoped, tag = 'scoped memory for tpu_custom_call.1']
    #allocation11 [shape = 'u8[1024]{0}', space=vmem, size = 0x400, scoped, tag = 'input window, operand 2']
    #allocation12 [shape = 'u8[24576]{0}', space=vmem, size = 0x6000, scoped, tag = 'output window, operand 0']
    %8 = vsyncpa [#allocation7], 0
    %9 = vsyncpa [#allocation10], 0
    %s10 = scalar_lea.sflag [#allocation10], 1
    %11 = vsyncpa %s10, 0
    %12 = vsyncpa [#allocation8], 0
    %s13 = scalar_lea.sflag [#allocation8], 1
    %14 = vsyncpa %s13, 0
    loop: start=0, step=1, limit=10
    $region2: #{tpu_custom_call.1} parent=1 // loop_pre_header
      _
    $region3: #{tpu_custom_call.1} parent=1 // loop_header
      %s16 = sphi 0, %s20
      %p17 = scmp.ge.s32.totalorder %s16, 10
      %s23 = sphi 0, %s42
      %s24 = sphi 0, %s38
      %s25 = sphi 0, %s34
      %s26 = sphi 0, %s23
      %s27 = sphi 0, %s24
      %s28 = sphi 0, %s25
      %s29 = sphi 0, %s26
      %s30 = sphi 0, %s27
      %s31 = sphi 0, %s28
      %s45 = sphi 0, %s47
      %s48 = sphi 0, %s45
      %s49 = sphi 0, %s48
      %s65 = sphi 0, %s49
      %s75 = sphi 0, %s77
      %s78 = sphi 0, %s75
      %s79 = sphi 0, %s78
      %s95 = sphi 0, %s79
      %s105 = sphi 0, %s107
      %s108 = sphi 0, %s105
      %s109 = sphi 0, %s108
      %s125 = sphi 0, %s109
      %s135 = sphi 0, %s137
      %s138 = sphi 0, %s135
      %s139 = sphi 0, %s138
      %s155 = sphi 0, %s139
    $region4: #{tpu_custom_call.1} parent=1 // loop_header_branch
      %19 = sbr.rel (%p17) target = $region8
    $region5: #{tpu_custom_call.1} parent=1 // loop_body
      %s21 = ssub.s32 %s16, 1
      %s22 = ssub.s32 %s16, 2
      %s32 = sadd.s32 1, %s25
      %p33 = scmp.ge.s32.totalorder %s32, 4
      %s34 = scalar_select %p33, 0, %s32
      %s35 = sadd.s32 1, %s24
      %s36 = scalar_select %p33, %s35, %s24
      %p37 = scmp.ge.s32.totalorder %s36, 2
      %s38 = scalar_select %p37, 0, %s36
      %s39 = sadd.s32 1, %s23
      %s40 = scalar_select %p37, %s39, %s23
      %p41 = scmp.ge.s32.totalorder %s40, 1
      %s42 = scalar_select %p41, 0, %s40
      %s43 = ssub.s32 %s23, %s42
      %p44 = scmp.eq.s32.totalorder %s43, 0
      %s46 = sadd.s32 %s45, 1
      %s47 = scalar_select %p44, %s45, %s46
      %p50 = pneg %p44
      %p51 = scmp.eq.s32.totalorder %s16, 7
      %p52 = por %p50, %p51
      %p53 = scmp.ne.s32.totalorder %s45, %s48
      %p54 = scmp.eq.s32.totalorder %s16, 0
      %p55 = por %p53, %p54
      %p56 = scmp.ne.s32.totalorder %s45, %s48
      %p57 = scmp.eq.s32.totalorder %s21, 7
      %p58 = por %p56, %p57
      %p59 = scmp.ne.s32.totalorder %s48, %s49
      %p60 = scmp.eq.s32.totalorder %s21, 0
      %p61 = por %p59, %p60
      %p62 = scmp.ne.s32.totalorder %s48, %s49
      %p63 = scmp.eq.s32.totalorder %s22, 7
      %p64 = por %p62, %p63
      %p66 = scmp.ne.s32.totalorder %s49, %s65
      %p67 = scmp.eq.s32.totalorder %s22, 0
      %p68 = por %p66, %p67
      %s69 = ssub.s32 1, %s24
      %s70 = smul.u32 %s25, %s69
      %s71 = ssub.s32 1, %s38
      %s72 = smul.u32 %s34, %s71
      %s73 = ssub.s32 %s70, %s72
      %p74 = scmp.eq.s32.totalorder %s73, 0
      %s76 = sadd.s32 %s75, 1
      %s77 = scalar_select %p74, %s75, %s76
      %p80 = pneg %p74
      %p81 = scmp.eq.s32.totalorder %s16, 7
      %p82 = por %p80, %p81
      %p83 = scmp.ne.s32.totalorder %s75, %s78
      %p84 = scmp.eq.s32.totalorder %s16, 0
      %p85 = por %p83, %p84
      %p86 = scmp.ne.s32.totalorder %s75, %s78
      %p87 = scmp.eq.s32.totalorder %s21, 7
      %p88 = por %p86, %p87
      %p89 = scmp.ne.s32.totalorder %s78, %s79
      %p90 = scmp.eq.s32.totalorder %s21, 0
      %p91 = por %p89, %p90
      %p92 = scmp.ne.s32.totalorder %s78, %s79
      %p93 = scmp.eq.s32.totalorder %s22, 7
      %p94 = por %p92, %p93
      %p96 = scmp.ne.s32.totalorder %s79, %s95
      %p97 = scmp.eq.s32.totalorder %s22, 0
      %p98 = por %p96, %p97
      %s99 = ssub.s32 1, %s24
      %s100 = smul.u32 %s25, %s99
      %s101 = ssub.s32 1, %s38
      %s102 = smul.u32 %s34, %s101
      %s103 = ssub.s32 %s100, %s102
      %p104 = scmp.eq.s32.totalorder %s103, 0
      %s106 = sadd.s32 %s105, 1
      %s107 = scalar_select %p104, %s105, %s106
      %p110 = pneg %p104
      %p111 = scmp.eq.s32.totalorder %s16, 7
      %p112 = por %p110, %p111
      %p113 = scmp.ne.s32.totalorder %s105, %s108
      %p114 = scmp.eq.s32.totalorder %s16, 0
      %p115 = por %p113, %p114
      %p116 = scmp.ne.s32.totalorder %s105, %s108
      %p117 = scmp.eq.s32.totalorder %s21, 7
      %p118 = por %p116, %p117
      %p119 = scmp.ne.s32.totalorder %s108, %s109
      %p120 = scmp.eq.s32.totalorder %s21, 0
      %p121 = por %p119, %p120
      %p122 = scmp.ne.s32.totalorder %s108, %s109
      %p123 = scmp.eq.s32.totalorder %s22, 7
      %p124 = por %p122, %p123
      %p126 = scmp.ne.s32.totalorder %s109, %s125
      %p127 = scmp.eq.s32.totalorder %s22, 0
      %p128 = por %p126, %p127
      %s129 = smul.u32 %s25, %s24
      %s130 = smul.u32 %s34, %s38
      %s131 = ssub.s32 %s23, %s42
      %s132 = ssub.s32 %s129, %s130
      %s133 = sor.u32 %s131, %s132
      %p134 = scmp.eq.s32.totalorder %s133, 0
      %s136 = sadd.s32 %s135, 1
      %s137 = scalar_select %p134, %s135, %s136
      %p140 = pneg %p134
      %p141 = scmp.eq.s32.totalorder %s16, 7
      %p142 = por %p140, %p141
      %p143 = scmp.ne.s32.totalorder %s135, %s138
      %p144 = scmp.eq.s32.totalorder %s16, 0
      %p145 = por %p143, %p144
      %p146 = scmp.ne.s32.totalorder %s135, %s138
      %p147 = scmp.eq.s32.totalorder %s21, 7
      %p148 = por %p146, %p147
      %p149 = scmp.ne.s32.totalorder %s138, %s139
      %p150 = scmp.eq.s32.totalorder %s21, 0
      %p151 = por %p149, %p150
      %p152 = scmp.ne.s32.totalorder %s138, %s139
      %p153 = scmp.eq.s32.totalorder %s22, 7
      %p154 = por %p152, %p153
      %p156 = scmp.ne.s32.totalorder %s139, %s155
      %p157 = scmp.eq.s32.totalorder %s22, 0
      %p158 = por %p156, %p157
      %p159 = scmp.le.s32.totalorder 1, %s16
      %p160 = scmp.lt.s32.totalorder %s16, 9
      %p161 = pnand %p159, %p160
      %p162 = pneg %p161
      // Predicated region
      $region9: #{tpu_custom_call.1} parent=5 // pred_check
        _
      $region10: #{tpu_custom_call.1} parent=5 // pred_check_branch
        %164 = sbr.rel (%p161) target = $region12
      $region11: #{tpu_custom_call.1} parent=5 // pred_region
        %s165 = ssub.s32 %s16, 1
        // Predicated region
        $region13: #{tpu_custom_call.1} parent=11 // pred_check
          %p166 = pneg %p61
        $region14: #{tpu_custom_call.1} parent=11 // pred_check_branch
          %168 = sbr.rel (%p166) target = $region16
        $region15: #{tpu_custom_call.1} parent=11 // pred_region
          %s169 = smul.u32 3, %s26
          %171 = vsyncadd [#allocation7], 0
          %s172 = smul.addr %s169, 4
          %s173 = scalar_lea.hbm %s0, %s172
          %s174 = sshll.u32 %s173, 4
          %s175 = int_to_ptr.hbm [resolvable:$true] %s174
          %s176 = sshll.u32 [#allocation6], 4
          %s177 = int_to_ptr.vmem [resolvable:$true] %s176
          %182 = dma.hbm_to_vmem [thread:$0]  %s175, 192, %s177, [#allocation7], 64, 64, 4
        $region16: #{tpu_custom_call.1} parent=11 // pred_fallthru
          _
      $region12: #{tpu_custom_call.1} parent=5 // pred_fallthru
        _
      %p183 = scmp.lt.s32.totalorder %s16, 8
      // Predicated region
      $region17: #{tpu_custom_call.1} parent=5 // pred_check
        %p184 = pneg %p183
      $region18: #{tpu_custom_call.1} parent=5 // pred_check_branch
        %186 = sbr.rel (%p184) target = $region20
      $region19: #{tpu_custom_call.1} parent=5 // pred_region
        // Predicated region
        $region21: #{tpu_custom_call.1} parent=19 // pred_check
          %p187 = pneg %p85
        $region22: #{tpu_custom_call.1} parent=19 // pred_check_branch
          %189 = sbr.rel (%p187) target = $region24
        $region23: #{tpu_custom_call.1} parent=19 // pred_region
          %s190 = sand.u32 %s16, 1
          %s191 = scalar_lea.sflag [#allocation10], %s190
          %s192 = sand.u32 %s75, 1
          %s193 = smul.addr %s192, 32
          %s194 = scalar_lea.vmem [#allocation9], %s193
          %s195 = ssub.s32 1, %s24
          %s196 = smul.u32 %s25, %s195
          %198 = vsyncadd %s191, 0
          %s199 = smul.addr %s196, 4
          %s200 = scalar_lea.hbm %s1, %s199
          %s201 = sshll.u32 %s200, 4
          %s202 = int_to_ptr.hbm [resolvable:$true] %s201
          %s203 = sshll.u32 %s194, 4
          %s204 = int_to_ptr.vmem [resolvable:$true] %s203
          %209 = dma.hbm_to_vmem [thread:$0]  %s202, 512, %s204, %s191, 256, 64, 4
        $region24: #{tpu_custom_call.1} parent=19 // pred_fallthru
          _
        // Predicated region
        $region25: #{tpu_custom_call.1} parent=19 // pred_check
          %p210 = pneg %p115
        $region26: #{tpu_custom_call.1} parent=19 // pred_check_branch
          %212 = sbr.rel (%p210) target = $region28
        $region27: #{tpu_custom_call.1} parent=19 // pred_region
          %s213 = sand.u32 %s16, 1
          %s214 = scalar_lea.sflag [#allocation10], %s213
          %s215 = sand.u32 %s105, 1
          %s216 = scalar_lea.vmem [#allocation11], %s215
          %s217 = ssub.s32 1, %s24
          %s218 = smul.u32 %s25, %s217
          %220 = vsyncadd %s214, 0
          %s221 = scalar_lea.hbm %s2, %s218
          %s223 = sshll.u32 %s221, 4
          %s224 = int_to_ptr.hbm [resolvable:$true] %s223
          %s225 = sshll.u32 %s216, 4
          %s226 = int_to_ptr.vmem [resolvable:$true] %s225
          %228 = dma.hbm_to_vmem [thread:$0]  %s224, 16, %s226, %s214
        $region28: #{tpu_custom_call.1} parent=19 // pred_fallthru
          _
      $region20: #{tpu_custom_call.1} parent=5 // pred_fallthru
        _
      %p229 = scmp.le.s32.totalorder 1, %s16
      %p230 = scmp.lt.s32.totalorder %s16, 9
      %p231 = pnand %p229, %p230
      %p232 = pneg %p231
      // Predicated region
      $region29: #{tpu_custom_call.1} parent=5 // pred_check
        _
      $region30: #{tpu_custom_call.1} parent=5 // pred_check_branch
        %234 = sbr.rel (%p231) target = $region32
      $region31: #{tpu_custom_call.1} parent=5 // pred_region
        %s235 = ssub.s32 %s16, 1
        // Predicated region
        $region33: #{tpu_custom_call.1} parent=31 // pred_check
          %p236 = pneg %p61
        $region34: #{tpu_custom_call.1} parent=31 // pred_check_branch
          %238 = sbr.rel (%p236) target = $region36
        $region35: #{tpu_custom_call.1} parent=31 // pred_region
          %240 = dma.done [#allocation7], 192
        $region36: #{tpu_custom_call.1} parent=31 // pred_fallthru
          _
        %s241 = sand.u32 %s21, 1
        %s242 = scalar_lea.sflag [#allocation10], %s241
        %s243 = sand.u32 %s78, 1
        %s244 = smul.addr %s243, 32
        %s245 = scalar_lea.vmem [#allocation9], %s244
        // Predicated region
        $region37: #{tpu_custom_call.1} parent=31 // pred_check
          %p246 = pneg %p91
        $region38: #{tpu_custom_call.1} parent=31 // pred_check_branch
          %248 = sbr.rel (%p246) target = $region40
        $region39: #{tpu_custom_call.1} parent=31 // pred_region
          %250 = dma.done %s242, 512
        $region40: #{tpu_custom_call.1} parent=31 // pred_fallthru
          _
        %s251 = sand.u32 %s21, 1
        %s252 = scalar_lea.sflag [#allocation10], %s251
        %s253 = sand.u32 %s108, 1
        %s254 = scalar_lea.vmem [#allocation11], %s253
        // Predicated region
        $region41: #{tpu_custom_call.1} parent=31 // pred_check
          %p255 = pneg %p121
        $region42: #{tpu_custom_call.1} parent=31 // pred_check_branch
          %257 = sbr.rel (%p255) target = $region44
        $region43: #{tpu_custom_call.1} parent=31 // pred_region
          %259 = dma.done %s252, 16
        $region44: #{tpu_custom_call.1} parent=31 // pred_fallthru
          _
        %p260 = pneg %p61
        %p261 = pneg %p58
        %s262 = sand.u32 %s21, 1
        %s263 = scalar_lea.sflag [#allocation10], %s262
        %s264 = sand.u32 %s78, 1
        %s265 = smul.addr %s264, 32
        %s266 = scalar_lea.vmem [#allocation9], %s265
        %p267 = pneg %p91
        %p268 = pneg %p88
        %s269 = sand.u32 %s21, 1
        %s270 = scalar_lea.sflag [#allocation10], %s269
        %s271 = sand.u32 %s108, 1
        %s272 = scalar_lea.vmem [#allocation11], %s271
        %p273 = pneg %p121
        %p274 = pneg %p118
        %p275 = pneg %p151
        %p276 = pneg %p148
        %s277 = sand.u32 %s138, 1
        %s278 = scalar_lea.sflag [#allocation8], %s277
        %s279 = sand.u32 %s138, 1
        %s280 = smul.addr %s279, 24
        %s281 = scalar_lea.vmem [#allocation12], %s280
        %s282 = smul.u32 3, %s26
        %s283 = ssub.s32 1, %s27
        %s284 = smul.u32 %s28, %s283
        %s285 = ssub.s32 1, %s27
        %s286 = smul.u32 %s28, %s285
        %s287 = smul.u32 %s28, %s27
        %s288 = smul.u32 3, %s26
        %p290 = scmp.eq.s32.totalorder %s27, 0
        %p291 = scmp.eq.s32.totalorder %s28, 0
        %p292 = pnand %p290, %p291
        %p293 = pneg %p292
        // Predicated region
        $region45: #{tpu_custom_call.1} parent=31 // pred_check
          _
        $region46: #{tpu_custom_call.1} parent=31 // pred_check_branch
          %295 = sbr.rel (%p292) target = $region48
        $region47: #{tpu_custom_call.1} parent=31 // pred_region
          %vm296 = vcmask 7168
          %297 = vst.msk [vmem:[#allocation3] sm:$0xff] %vm296, -3e+38
          %298 = vst.msk [vmem:[#allocation3 + $0x8] sm:$0xff] %vm296, -3e+38
          %299 = vst.msk [vmem:[#allocation3 + $0x10] sm:$0xff] %vm296, -3e+38
          %300 = vst.msk [vmem:[#allocation4] sm:$0xff] %vm296, 0.0
          %301 = vst.msk [vmem:[#allocation4 + $0x8] sm:$0xff] %vm296, 0.0
          %302 = vst.msk [vmem:[#allocation4 + $0x10] sm:$0xff] %vm296, 0.0
        $region48: #{tpu_custom_call.1} parent=31 // pred_fallthru
          _
        // Predicated region
        $region49: #{tpu_custom_call.1} parent=31 // pred_check
          %p303 = pneg %p290
        $region50: #{tpu_custom_call.1} parent=31 // pred_check_branch
          %305 = sbr.rel (%p303) target = $region52
        $region51: #{tpu_custom_call.1} parent=31 // pred_region
          %v306 = vld [vmem:[#allocation6] sm:$0xf]
          %v307 = vld [vmem:[#allocation6 + $0x4] sm:$0xf]
          %v308 = vld [vmem:[#allocation6 + $0x8] sm:$0xf]
          %v309 = vld [vmem:[%s245] sm:$0xf]
          %v310 = vld [vmem:[%s245 + $0x4] sm:$0xf]
          %v311 = vld [vmem:[%s245 + $0x8] sm:$0xf]
          %v312 = vld [vmem:[%s245 + $0xc] sm:$0xf]
          %v313 = vld [vmem:[%s245 + $0x10] sm:$0xf]
          %v314 = vld [vmem:[%s245 + $0x14] sm:$0xf]
          %v315 = vld [vmem:[%s245 + $0x18] sm:$0xf]
          %v316 = vld [vmem:[%s245 + $0x1c] sm:$0xf]
          %v317 = vld [vmem:[%s254] sm:$0x1]
          %v319 = vperm.slane %v317, 0
          %v324 = vunpack.c.l.b16 %v306
          %v325 = vunpack.c.l.b16 %v307
          %v326 = vunpack.c.l.b16 %v308
          %v327 = vpack.c.b16 %v325, %v324
          %v328 = vpack.c.b16 %v326, %v326
          %v337 = vunpack.c.l.b16 %v309
          %v338 = vunpack.c.l.b16 %v310
          %v339 = vunpack.c.l.b16 %v311
          %v340 = vunpack.c.l.b16 %v312
          %v341 = vunpack.c.l.b16 %v313
          %v342 = vunpack.c.l.b16 %v314
          %v343 = vunpack.c.l.b16 %v315
          %v344 = vunpack.c.l.b16 %v316
          %v345 = vpack.c.b16 %v338, %v337
          %v346 = vpack.c.b16 %v340, %v339
          %v347 = vpack.c.b16 %v342, %v341
          %v348 = vpack.c.b16 %v344, %v343
          %vm353 = vcmask 523264
          %v355 = vsel %vm353, %v327, 0
          %v358 = vsel %vm353, %v328, 0
          %360 = vmatpush.bf16.msra.mxu0 0
          %361 = vmatpush.bf16.msra.mxu0 0
          %362 = vmatpush.bf16.msra.mxu0 0
          %363 = vmatpush.bf16.msra.mxu0 0
          %364 = vmatpush.bf16.msra.mxu0 %v348
          %365 = vmatpush.bf16.msra.mxu0 %v347
          %366 = vmatpush.bf16.msra.mxu0 %v346
          %367 = vmatpush.bf16.msra.mxu0 %v345
          %368 = vmatmul.bf16.gmra.mxu0 %v355
          %v369 = vpop.f32.mrf.mxu0
          %v370 = vadd.f32 %v319, %v369
          %v371 = vpop.f32.mrf.mxu0
          %v372 = vadd.f32 %v319, %v371
          %373 = vmatmul.bf16.gmra.mxu0 %v358
          %v374 = vpop.f32.mrf.mxu0
          %v375 = vadd.f32 %v319, %v374
          %v376 = vpop.f32.mrf.mxu0
          %377 = vdwg.mxu0
          %s378 = smul.u32 %s28, 128
          %s379 = sshra.s32 %s378, 7
          %s380 = sand.u32 %s378, 127
          %s381 = smul.addr %s379, 8
          %s382 = scalar_lea.vmem [#allocation2], %s381
          %383 = vst [vmem:[%s382] sm:$0xff] %v370
          %384 = vst [vmem:[%s382 + $0x20] sm:$0xff] %v372
          %385 = vst [vmem:[%s382 + $0x40] sm:$0xff] %v375
          %v386 = vld [vmem:[#allocation3] sm:$0xff]
          %v387 = vld [vmem:[#allocation3 + $0x8] sm:$0xff]
          %v388 = vld [vmem:[#allocation3 + $0x10] sm:$0xff]
          %389 = vmax.xlane.f32.xlu0 %v370
          %v390 = vpop.xlane.xlu0 %389
          %391 = vmax.xlane.f32.xlu0 %v372
          %v392 = vpop.xlane.xlu0 %391
          %393 = vmax.xlane.f32.xlu0 %v375
          %v394 = vpop.xlane.xlu0 %393
          %v395 = vmax.f32 %v386, %v390
          %v396 = vmax.f32 %v387, %v392
          %v397 = vmax.f32 %v388, %v394
          %v398 = vld [vmem:[#allocation4] sm:$0xff]
          %v399 = vld [vmem:[#allocation4 + $0x8] sm:$0xff]
          %v400 = vld [vmem:[#allocation4 + $0x10] sm:$0xff]
          %v401 = vsub.f32 %v386, %v395
          %v402 = vsub.f32 %v387, %v396
          %v403 = vsub.f32 %v388, %v397
          %v404 = vmul.f32 %v401, 1.442695
          %v405 = vpow.pop %v404
          %v406 = vmul.f32 %v402, 1.442695
          %v407 = vpow.pop %v406
          %v408 = vmul.f32 %v403, 1.442695
          %v409 = vpow.pop %v408
          %v410 = vmul.f32 %v398, %v405
          %v411 = vmul.f32 %v399, %v407
          %v412 = vmul.f32 %v400, %v409
          %414 = vset.pattern.permute.xlu0 0
          %415 = vperm.xlu0 %414, %v395
          %v416 = vpop.permute.xlu0 %415
          %419 = vset.pattern.permute.xlu0 0
          %420 = vperm.xlu0 %419, %v396
          %v421 = vpop.permute.xlu0 %420
          %424 = vset.pattern.permute.xlu0 0
          %425 = vperm.xlu0 %424, %v397
          %v426 = vpop.permute.xlu0 %425
          %v428 = vsub.f32 %v370, %v416
          %v429 = vsub.f32 %v372, %v421
          %v430 = vsub.f32 %v375, %v426
          %v431 = vmul.f32 %v428, 1.442695
          %v432 = vpow.pop %v431
          %v433 = vmul.f32 %v429, 1.442695
          %v434 = vpow.pop %v433
          %v435 = vmul.f32 %v430, 1.442695
          %v436 = vpow.pop %v435
          %437 = vadd.xlane.f32.xlu0 %v432
          %v438 = vpop.xlane.xlu0 %437
          %439 = vadd.xlane.f32.xlu0 %v434
          %v440 = vpop.xlane.xlu0 %439
          %441 = vadd.xlane.f32.xlu0 %v436
          %v442 = vpop.xlane.xlu0 %441
          %v443 = vadd.f32 %v410, %v438
          %v444 = vadd.f32 %v411, %v440
          %v445 = vadd.f32 %v412, %v442
          %vm446 = vcmask 7168
          %447 = vst.msk [vmem:[#allocation4] sm:$0xff] %vm446, %v443
          %448 = vst.msk [vmem:[#allocation4 + $0x8] sm:$0xff] %vm446, %v444
          %449 = vst.msk [vmem:[#allocation4 + $0x10] sm:$0xff] %vm446, %v445
          %450 = vst.msk [vmem:[#allocation3] sm:$0xff] %vm446, %v395
          %451 = vst.msk [vmem:[#allocation3 + $0x8] sm:$0xff] %vm446, %v396
          %452 = vst.msk [vmem:[#allocation3 + $0x10] sm:$0xff] %vm446, %v397
        $region52: #{tpu_custom_call.1} parent=31 // pred_fallthru
          _
        %p453 = scmp.eq.s32.totalorder %s27, 1
        %p454 = pnand %p453, %p291
        %p455 = pneg %p454
        // Predicated region
        $region53: #{tpu_custom_call.1} parent=31 // pred_check
          _
        $region54: #{tpu_custom_call.1} parent=31 // pred_check_branch
          %457 = sbr.rel (%p454) target = $region56
        $region55: #{tpu_custom_call.1} parent=31 // pred_region
          %v458 = vld [vmem:[#allocation3] sm:$0xff]
          %v459 = vld [vmem:[#allocation3 + $0x8] sm:$0xff]
          %v460 = vld [vmem:[#allocation3 + $0x10] sm:$0xff]
          %v461 = vld [vmem:[#allocation4] sm:$0xff]
          %v462 = vld [vmem:[#allocation4 + $0x8] sm:$0xff]
          %v463 = vld [vmem:[#allocation4 + $0x10] sm:$0xff]
          %v464 = vlog2.pop %v461
          %v465 = vmul.f32 %v464, 0.6931472
          %v466 = vlog2.pop %v462
          %v467 = vmul.f32 %v466, 0.6931472
          %v468 = vlog2.pop %v463
          %v469 = vmul.f32 %v468, 0.6931472
          %v470 = vadd.f32 %v458, %v465
          %v471 = vadd.f32 %v459, %v467
          %v472 = vadd.f32 %v460, %v469
          %vm473 = vcmask 7168
          %474 = vst.msk [vmem:[#allocation5] sm:$0xff] %vm473, %v470
          %475 = vst.msk [vmem:[#allocation5 + $0x8] sm:$0xff] %vm473, %v471
          %476 = vst.msk [vmem:[#allocation5 + $0x10] sm:$0xff] %vm473, %v472
        $region56: #{tpu_custom_call.1} parent=31 // pred_fallthru
          _
        // Predicated region
        $region57: #{tpu_custom_call.1} parent=31 // pred_check
          %p477 = pneg %p453
        $region58: #{tpu_custom_call.1} parent=31 // pred_check_branch
          %479 = sbr.rel (%p477) target = $region60
        $region59: #{tpu_custom_call.1} parent=31 // pred_region
          %s480 = smul.u32 %s28, 128
          %s481 = sshra.s32 %s480, 7
          %s482 = sand.u32 %s480, 127
          %s483 = smul.addr %s481, 8
          %s484 = scalar_lea.vmem [#allocation2], %s483
          %v485 = vld [vmem:[%s484] sm:$0xff]
          %v486 = vld [vmem:[%s484 + $0x20] sm:$0xff]
          %v487 = vld [vmem:[%s484 + $0x40] sm:$0xff]
          %v488 = vld [vmem:[#allocation5] sm:$0xff]
          %v489 = vld [vmem:[#allocation5 + $0x8] sm:$0xff]
          %v490 = vld [vmem:[#allocation5 + $0x10] sm:$0xff]
          %492 = vset.pattern.permute.xlu0 0
          %493 = vperm.xlu0 %492, %v488
          %v494 = vpop.permute.xlu0 %493
          %497 = vset.pattern.permute.xlu0 0
          %498 = vperm.xlu0 %497, %v489
          %v499 = vpop.permute.xlu0 %498
          %502 = vset.pattern.permute.xlu0 0
          %503 = vperm.xlu0 %502, %v490
          %v504 = vpop.permute.xlu0 %503
          %v506 = vsub.f32 %v485, %v494
          %v507 = vsub.f32 %v486, %v499
          %v508 = vsub.f32 %v487, %v504
          %509 = vst [vmem:[%s281] sm:$0xff] %v506
          %510 = vst [vmem:[%s281 + $0x8] sm:$0xff] %v507
          %511 = vst [vmem:[%s281 + $0x10] sm:$0xff] %v508
        $region60: #{tpu_custom_call.1} parent=31 // pred_fallthru
          _
        %s512 = sand.u32 %s138, 1
        %s513 = scalar_lea.sflag [#allocation8], %s512
        %s514 = sand.u32 %s138, 1
        %s515 = smul.addr %s514, 24
        %s516 = scalar_lea.vmem [#allocation12], %s515
        // Predicated region
        $region61: #{tpu_custom_call.1} parent=31 // pred_check
          %p517 = pneg %p148
        $region62: #{tpu_custom_call.1} parent=31 // pred_check_branch
          %519 = sbr.rel (%p517) target = $region64
        $region63: #{tpu_custom_call.1} parent=31 // pred_region
          %s520 = smul.u32 %s28, %s27
          %s521 = smul.u32 3, %s26
          %523 = vsyncadd %s513, 0
          %s524 = smul.addr %s521, 4
          %s525 = sadd.s32 %s520, %s524
          %s526 = smul.addr %s525, 8
          %s527 = scalar_lea.hbm %s3, %s526
          %s528 = sshll.u32 %s516, 4
          %s529 = int_to_ptr.vmem [resolvable:$true] %s528
          %s530 = sshll.u32 %s527, 4
          %s531 = int_to_ptr.hbm [resolvable:$true] %s530
          %536 = dma.vmem_to_hbm [thread:$0]  %s529, 384, %s531, %s513, 128, 512, 8
        $region64: #{tpu_custom_call.1} parent=31 // pred_fallthru
          _
      $region32: #{tpu_custom_call.1} parent=5 // pred_fallthru
        _
      %p537 = scmp.le.s32.totalorder 2, %s16
      // Predicated region
      $region65: #{tpu_custom_call.1} parent=5 // pred_check
        %p538 = pneg %p537
      $region66: #{tpu_custom_call.1} parent=5 // pred_check_branch
        %540 = sbr.rel (%p538) target = $region68
      $region67: #{tpu_custom_call.1} parent=5 // pred_region
        %s541 = ssub.s32 %s16, 2
        // Predicated region
        $region69: #{tpu_custom_call.1} parent=67 // pred_check
          %p542 = pneg %p154
        $region70: #{tpu_custom_call.1} parent=67 // pred_check_branch
          %544 = sbr.rel (%p542) target = $region72
        $region71: #{tpu_custom_call.1} parent=67 // pred_region
          %s545 = sand.u32 %s139, 1
          %s546 = scalar_lea.sflag [#allocation8], %s545
          %s547 = sand.u32 %s139, 1
          %s548 = smul.addr %s547, 24
          %s549 = scalar_lea.vmem [#allocation12], %s548
          %551 = dma.done %s546, 384
        $region72: #{tpu_custom_call.1} parent=67 // pred_fallthru
          _
      $region68: #{tpu_custom_call.1} parent=5 // pred_fallthru
        _
    $region6: #{tpu_custom_call.1} parent=1 // loop_footer
      %s20 = sadd.s32 1, %s16
    $region7: #{tpu_custom_call.1} parent=1 // loop_footer_branch
      %15 = sbr.rel target = $region3
    $region8: #{tpu_custom_call.1} parent=1 // loop_exit
      _
    %552 = vsyncpa [#allocation7], 1
    %s553 = scalar_lea.sflag [#allocation7], 1
    %554 = vsyncpa %s553, 1
    %555 = vsyncpa [#allocation10], 1
    %s556 = scalar_lea.sflag [#allocation10], 1
    %557 = vsyncpa %s556, 1
    %558 = vsyncpa [#allocation8], 1
    %s559 = scalar_lea.sflag [#allocation8], 1
    %560 = vsyncpa %s559, 1

</llo_original>
